<compile_context>
chip_gen: v6e
topology: v6e:2x2x1
jax: 0.10.0
libtpu: 0.0.40
codegen_flags: <defaults>
</compile_context>

<pallas_src>
import functools

import jax
import jax.numpy as jnp
from jax.experimental import pallas as pl
from jax.experimental.pallas import tpu as pltpu


def _causal_conv1d_kernel(*refs, k, dilation, pad, t_tile, c_in, halo_blk,
                          fold, use_halo):
    # refs (use_halo):  x_ref(1,C_in,t_tile), xh_ref(1,C_in,halo_blk),
    #                   w_ref(co_tile,k*C_in), b_ref(co_tile,1), o_ref(1,co_tile,t_tile)
    # refs (else)    :  x_ref, w_ref, b_ref, o_ref
    if use_halo:
        x_ref, xh_ref, w_ref, b_ref, o_ref = refs
    else:
        x_ref, w_ref, b_ref, o_ref = refs

    x_cur = x_ref[0]                                        # (C_in, t_tile)

    halo = None
    if pad > 0:
        if use_halo:
            t = pl.program_id(1)
            halo = xh_ref[0][:, halo_blk - pad:]            # last `pad` cols of prev tile
            # Causal left pad: the halo of the first time tile is zeros.
            halo = jnp.where(t == 0, jnp.zeros_like(halo), halo)
        else:
            halo = jnp.zeros((c_in, pad), x_cur.dtype)      # single-tile case

    if fold:
        # Short contraction (C_in < 128): stack the k shifted windows along the
        # contraction axis -> one MXU matmul with contraction k*C_in.
        x_ext = x_cur if pad == 0 else jnp.concatenate([halo, x_cur], axis=-1)
        taps = [x_ext[:, i * dilation: i * dilation + t_tile] for i in range(k)]
        stacked = taps[0] if k == 1 else jnp.concatenate(taps, axis=0)
        acc = jnp.dot(w_ref[...], stacked, preferred_element_type=jnp.float32)
    else:
        # Native contraction: k accumulating matmuls.  Tap k-1 is exactly the
        # (aligned) current tile; only earlier taps need a shifted window.
        acc = jnp.dot(w_ref[:, (k - 1) * c_in: k * c_in], x_cur,
                      preferred_element_type=jnp.float32)
        for i in range(k - 1):
            s = pad - i * dilation                           # static, 0 < s <= pad
            win = jnp.concatenate([halo[:, i * dilation:], x_cur[:, :t_tile - s]],
                                  axis=-1)                   # (C_in, t_tile)
            acc = acc + jnp.dot(w_ref[:, i * c_in: (i + 1) * c_in], win,
                                preferred_element_type=jnp.float32)

    o_ref[0] = (acc + b_ref[...]).astype(o_ref.dtype)


def _round_up(x, m):
    return -(-x // m) * m


def _vmem_capacity_bytes():
    try:
        return int(pltpu.get_tpu_info().vmem_capacity_bytes)
    except Exception:
        return 64 * 1024 * 1024          # conservative fallback (v7x per-core VMEM)


def _footprint_bytes(t_tile, *, c_in, co_tile, k, halo_blk, itemsize, fold):
    fp = 2 * c_in * (t_tile + halo_blk) * itemsize          # pipelined input (+halo)
    fp += 2 * co_tile * t_tile * itemsize                   # pipelined output
    fp += 2 * (co_tile * k * c_in + co_tile) * itemsize     # weight + bias blocks
    fp += co_tile * t_tile * 4                              # f32 accumulator
    n_window_rows = k * c_in if fold else max(k - 1, 0) * c_in
    fp += n_window_rows * t_tile * itemsize                 # shifted-window temporaries
    return fp


def _choose_t_tile(T, *, pad, halo_blk, c_in, co_tile, k, itemsize, fold, budget):
    if T % 128 != 0:
        return T                          # unaligned T: single full-length tile
    cands = sorted({c for c in (T, 4096, 2048, 1024, 512, 256, 128)
                    if c <= T and T % c == 0}, reverse=True)
    # Multi-tile path needs the tile to be larger than the halo and a whole number
    # of halo blocks (so the halo BlockSpec index arithmetic stays block-aligned).
    valid = [c for c in cands
             if c == T or pad == 0 or (c > pad and c % halo_blk == 0)]
    if not valid:
        return T
    for c in valid:                       # largest tile that fits the VMEM budget
        if _footprint_bytes(c, c_in=c_in, co_tile=co_tile, k=k, halo_blk=halo_blk,
                            itemsize=itemsize, fold=fold) <= budget:
            return c
    return valid[-1]


def _choose_co_tile(c_out):
    if c_out <= 256:
        return c_out
    for cand in (256, 128):
        if c_out % cand == 0:
            return cand
    return c_out


def causal_conv1d(x, weight, bias, *, dilation=1, t_tile=None, co_tile=None,
                  fold=None):
    """x: (B, C_in, T); weight: (C_out, C_in, k); bias: (C_out,). Returns (B, C_out, T)."""
    B, c_in, T = x.shape
    c_out, c_in_w, k = weight.shape
    assert c_in_w == c_in
    pad = (k - 1) * dilation
    halo_blk = _round_up(pad, 128) if pad > 0 else 0
    itemsize = x.dtype.itemsize

    if fold is None:
        fold = c_in < 128                 # fold taps only to lengthen short contractions
    if co_tile is None:
        co_tile = _choose_co_tile(c_out)
    if c_out % co_tile != 0:
        raise ValueError(f"co_tile={co_tile} must divide C_out={c_out}")
    num_co = c_out // co_tile

    vmem_cap = _vmem_capacity_bytes()
    budget = max(8 << 20, vmem_cap // 3)
    if t_tile is None:
        t_tile = _choose_t_tile(T, pad=pad, halo_blk=halo_blk, c_in=c_in,
                                co_tile=co_tile, k=k, itemsize=itemsize,
                                fold=fold, budget=budget)
    if T % t_tile != 0:
        raise ValueError(f"t_tile={t_tile} must divide T={T}")
    num_t = T // t_tile
    use_halo = pad > 0 and num_t > 1
    if use_halo and (t_tile <= pad or t_tile % halo_blk != 0):
        raise ValueError(
            f"time-tiling needs t_tile > pad={pad} and t_tile % {halo_blk} == 0; "
            f"got t_tile={t_tile}")

    # Fold taps into the contraction dim: W_f[co, i*C_in + ci] = weight[co, ci, i].
    w_folded = jnp.transpose(weight, (0, 2, 1)).reshape(c_out, k * c_in)
    b_col = bias.reshape(c_out, 1)

    in_specs = [pl.BlockSpec((1, c_in, t_tile), lambda b, t, j: (b, 0, t))]
    operands = [x]
    if use_halo:
        r = t_tile // halo_blk            # halo = 128-aligned block just before tile t
        in_specs.append(pl.BlockSpec(
            (1, c_in, halo_blk),
            lambda b, t, j: (b, 0, jnp.maximum(t * r - 1, 0))))
        operands.append(x)                # same array, second (over-fetching) view
    in_specs += [
        pl.BlockSpec((co_tile, k * c_in), lambda b, t, j: (j, 0)),  # invariant in b,t
        pl.BlockSpec((co_tile, 1), lambda b, t, j: (j, 0)),
    ]
    operands += [w_folded, b_col]

    kernel = functools.partial(
        _causal_conv1d_kernel, k=k, dilation=dilation, pad=pad, t_tile=t_tile,
        c_in=c_in, halo_blk=halo_blk, fold=fold, use_halo=use_halo)

    return pl.pallas_call(
        kernel,
        out_shape=jax.ShapeDtypeStruct((B, c_out, T), x.dtype),
        grid_spec=pltpu.PrefetchScalarGridSpec(
            num_scalar_prefetch=0,
            grid=(B, num_t, num_co),
            in_specs=in_specs,
            out_specs=pl.BlockSpec((1, co_tile, t_tile), lambda b, t, j: (b, j, t)),
        ),
        compiler_params=pltpu.CompilerParams(
            dimension_semantics=("parallel", "parallel", "parallel"),
            vmem_limit_bytes=min(int(vmem_cap * 3 // 4), 96 * 1024 * 1024),
        ),
    )(*operands)


def _reference(x, weight, bias, dilation):
    # Pure-JAX reference of the PyTorch module (pad both sides, conv, slice to T).
    pad = (weight.shape[2] - 1) * dilation
    xp = jnp.pad(x, ((0, 0), (0, 0), (pad, pad)))
    y = jax.lax.conv_general_dilated(
        xp, weight, window_strides=(1,), padding="VALID",
        rhs_dilation=(dilation,), dimension_numbers=("NCH", "OIH", "NCH"))
    return (y + bias.reshape(1, -1, 1))[:, :, : x.shape[2]]


if __name__ == "__main__":
    root = jax.random.PRNGKey(0)
    k1, k2, k3 = jax.random.split(root, 3)

    def make(key, B, ci, co, T, K):
        kx, kw, kb = jax.random.split(key, 3)
        x = jax.random.normal(kx, (B, ci, T), dtype=jnp.float32)
        w = 0.1 * jax.random.normal(kw, (co, ci, K), dtype=jnp.float32)
        b = 0.1 * jax.random.normal(kb, (co,), dtype=jnp.float32)
        return x, w, b

    # 1) Tiny module-like shapes: single time tile, folded-tap path, zero left pad.
    x, w, b = make(k1, 2, 4, 6, 16, 3)
    y = causal_conv1d(x, w, b, dilation=2)
    jax.block_until_ready(y)
    assert y.shape == (2, 6, 16)
    assert jnp.allclose(y, _reference(x, w, b, 2), atol=1e-5, rtol=1e-5)

    # 2) Lane-aligned T, multiple time tiles: exercises the over-fetched halo blocks.
    x, w, b = make(k2, 2, 8, 8, 256, 3)
    y = causal_conv1d(x, w, b, dilation=1, t_tile=128)        # num_t = 2
    jax.block_until_ready(y)
    assert y.shape == (2, 8, 256)
    assert jnp.allclose(y, _reference(x, w, b, 1), atol=1e-5, rtol=1e-5)

    # 3) Per-tap matmul path + C_out grid axis (forced on small shapes for the test).
    x, w, b = make(k3, 1, 8, 16, 256, 2)
    y = causal_conv1d(x, w, b, dilation=3, t_tile=128, co_tile=8, fold=False)
    jax.block_until_ready(y)
    assert y.shape == (1, 16, 256)
    assert jnp.allclose(y, _reference(x, w, b, 3), atol=1e-5, rtol=1e-5)

    print("KERNEL_OK")
</pallas_src>

<mosaic_0001>
module attributes {stable_mosaic.version = 11 : i64} {
  func.func @_causal_conv1d_kernel(%arg0: i32, %arg1: i32, %arg2: i32, %arg3: memref<1x4x16xf32, #tpu.memory_space<vmem>>, %arg4: memref<6x12xf32, #tpu.memory_space<vmem>>, %arg5: memref<6x1xf32, #tpu.memory_space<vmem>>, %arg6: memref<1x6x16xf32, #tpu.memory_space<vmem>>) attributes {dimension_semantics = [#tpu.dimension_semantics<parallel>, #tpu.dimension_semantics<parallel>, #tpu.dimension_semantics<parallel>], iteration_bounds = array<i64: 2, 1, 1>, scalar_prefetch = 0 : i64, scratch_operands = 0 : i64, tpu.core_type = #tpu.core_type<tc>, window_params = [{transform_indices = @transform_0, window_bounds = array<i64: 1, 4, 16>}, {transform_indices = @transform_1, window_bounds = array<i64: 6, 12>}, {transform_indices = @transform_2, window_bounds = array<i64: 6, 1>}, {transform_indices = @transform_3, window_bounds = array<i64: 1, 6, 16>}]} {
    %c0 = arith.constant 0 : index
    %c0_0 = arith.constant 0 : index
    %c0_1 = arith.constant 0 : index
    %0 = vector.load %arg3[%c0, %c0_0, %c0_1] : memref<1x4x16xf32, #tpu.memory_space<vmem>>, vector<1x4x16xf32>
    %1 = vector.shape_cast %0 : vector<1x4x16xf32> to vector<4x16xf32>
    %cst = arith.constant 0.000000e+00 : f32
    %2 = vector.broadcast %cst : f32 to vector<4x4xf32>
    %3 = tpu.concatenate %2, %1 in 1 : vector<4x4xf32>, vector<4x16xf32> -> vector<4x20xf32>
    %4 = vector.extract_strided_slice %3 {offsets = [0, 0], sizes = [4, 16], strides = [1, 1]} : vector<4x20xf32> to vector<4x16xf32>
    %5 = vector.extract_strided_slice %3 {offsets = [0, 2], sizes = [4, 16], strides = [1, 1]} : vector<4x20xf32> to vector<4x16xf32>
    %6 = vector.extract_strided_slice %3 {offsets = [0, 4], sizes = [4, 16], strides = [1, 1]} : vector<4x20xf32> to vector<4x16xf32>
    %7 = tpu.concatenate %4, %5, %6 in 0 : vector<4x16xf32>, vector<4x16xf32>, vector<4x16xf32> -> vector<12x16xf32>
    %c0_2 = arith.constant 0 : index
    %c0_3 = arith.constant 0 : index
    %8 = vector.load %arg4[%c0_2, %c0_3] : memref<6x12xf32, #tpu.memory_space<vmem>>, vector<6x12xf32>
    %cst_4 = arith.constant dense<0.000000e+00> : vector<6x16xf32>
    %9 = tpu.matmul %8, %7, %cst_4 {dimension_numbers = #tpu.dot_dimension_numbers<[1], [0], [0], [1], [0, 0, 1, 1], [], []>} : vector<6x12xf32>, vector<12x16xf32>, vector<6x16xf32> -> vector<6x16xf32>
    %c0_5 = arith.constant 0 : index
    %c0_6 = arith.constant 0 : index
    %10 = vector.load %arg5[%c0_5, %c0_6] : memref<6x1xf32, #tpu.memory_space<vmem>>, vector<6x1xf32>
    %11 = vector.broadcast %10 : vector<6x1xf32> to vector<6x16xf32>
    %12 = arith.addf %9, %11 : vector<6x16xf32>
    %c0_7 = arith.constant 0 : index
    %c0_8 = arith.constant 0 : index
    %c0_9 = arith.constant 0 : index
    %13 = vector.load %arg6[%c0_7, %c0_8, %c0_9] : memref<1x6x16xf32, #tpu.memory_space<vmem>>, vector<1x6x16xf32>
    %14 = vector.shape_cast %13 : vector<1x6x16xf32> to vector<6x16xf32>
    %15 = vector.shape_cast %12 : vector<6x16xf32> to vector<1x6x16xf32>
    tpu.vector_store %arg6[%c0_7, %c0_8, %c0_9], %15 {strides = array<i32>} : memref<1x6x16xf32, #tpu.memory_space<vmem>>, vector<1x6x16xf32>,
    return
  }
  func.func @transform_0(%arg0: i32, %arg1: i32, %arg2: i32) -> (i32, i32, i32) {
    %c0_i32 = arith.constant 0 : i32
    %c0_i32_0 = arith.constant 0 : i32
    return %arg0, %c0_i32, %arg1 : i32, i32, i32
  }
  func.func @transform_1(%arg0: i32, %arg1: i32, %arg2: i32) -> (i32, i32) {
    %c0_i32 = arith.constant 0 : i32
    %c0_i32_0 = arith.constant 0 : i32
    return %arg2, %c0_i32 : i32, i32
  }
  func.func @transform_2(%arg0: i32, %arg1: i32, %arg2: i32) -> (i32, i32) {
    %c0_i32 = arith.constant 0 : i32
    %c0_i32_0 = arith.constant 0 : i32
    return %arg2, %c0_i32 : i32, i32
  }
  func.func @transform_3(%arg0: i32, %arg1: i32, %arg2: i32) -> (i32, i32, i32) {
    %c0_i32 = arith.constant 0 : i32
    return %arg0, %arg2, %arg1 : i32, i32, i32
  }
}

</mosaic_0001>

<llo_original>
// kernel: tpu_custom_call.1
$region0: #{tpu_custom_call.1}
  #allocation0 [shape = 'u32[]', space=smem, size = 0x4, offset = 0x4, fixed_abs, tag = 'smem constant byte address 0x4 - core index']
  #allocation1 [shape = 'u32[144,128]{1,0:T(1,128)}', space=vmem, size = 0x12000, scoped, tag = 'internal scratch']
  %s0 = inlined_call_operand.vmem [shape: f32[2,4,16], index: 0, kind: input, shape index: {}]
  %s1 = inlined_call_operand.hbm [shape: f32[6,12], index: 1, kind: input, shape index: {}]
  %s2 = inlined_call_operand.vmem [shape: f32[6,1], index: 2, kind: input, shape index: {}]
  %s3 = inlined_call_operand.vmem [shape: f32[2,6,16], index: 3, kind: output, shape index: {}]
  %s4 = sld [smem:[#allocation0]]
  $region49: #{tpu_custom_call.1} parent=0
    _
  %s6 = ssub.s32 1, %s4
  %s7 = scalar_select 0, %s6, %s4
  $region1: #{tpu_custom_call.1} parent=0
    #allocation2 [shape = 'u8[4096]{0}', space=vmem, size = 0x1000, scoped, tag = 'input window, operand 1, single buffered']
    #allocation3 [shape = 's32[2]{0}', space=sflag, size = 0x8, scoped, tag = 'scoped memory for tpu_custom_call.1']
    %8 = vsyncpa [#allocation3], 0
    loop: start=0, step=1, limit=4
    $region2: #{tpu_custom_call.1} parent=1 // loop_pre_header
      _
    $region3: #{tpu_custom_call.1} parent=1 // loop_header
      %s10 = sphi 0, %s14
      %p11 = scmp.ge.s32.totalorder %s10, 4
      %s17 = sphi 0, %s36
      %s18 = sphi 0, %s32
      %s19 = sphi 0, %s28
      %s20 = sphi 0, %s17
      %s21 = sphi 0, %s18
      %s22 = sphi 0, %s19
      %s23 = sphi 0, %s20
      %s24 = sphi 0, %s21
      %s25 = sphi 0, %s22
      %s41 = sphi 0, %s43
      %s44 = sphi 0, %s41
      %s45 = sphi 0, %s44
      %s61 = sphi 0, %s45
      %s67 = sphi 0, %s69
      %s70 = sphi 0, %s67
      %s71 = sphi 0, %s70
      %s87 = sphi 0, %s71
      %s93 = sphi 0, %s95
      %s96 = sphi 0, %s93
      %s97 = sphi 0, %s96
      %s113 = sphi 0, %s97
      %s123 = sphi 0, %s125
      %s126 = sphi 0, %s123
      %s127 = sphi 0, %s126
      %s143 = sphi 0, %s127
    $region4: #{tpu_custom_call.1} parent=1 // loop_header_branch
      %13 = sbr.rel (%p11) target = $region8
    $region5: #{tpu_custom_call.1} parent=1 // loop_body
      %s15 = ssub.s32 %s10, 1
      %s16 = ssub.s32 %s10, 2
      %s26 = sadd.s32 1, %s19
      %p27 = scmp.ge.s32.totalorder %s26, 1
      %s28 = scalar_select %p27, 0, %s26
      %s29 = sadd.s32 1, %s18
      %s30 = scalar_select %p27, %s29, %s18
      %p31 = scmp.ge.s32.totalorder %s30, 1
      %s32 = scalar_select %p31, 0, %s30
      %s33 = sadd.s32 1, %s17
      %s34 = scalar_select %p31, %s33, %s17
      %p35 = scmp.ge.s32.totalorder %s34, 2
      %s36 = scalar_select %p35, 0, %s34
      %s37 = ssub.s32 %s17, %s36
      %s38 = ssub.s32 %s18, %s32
      %s39 = sor.u32 %s37, %s38
      %p40 = scmp.eq.s32.totalorder %s39, 0
      %s42 = sadd.s32 %s41, 1
      %s43 = scalar_select %p40, %s41, %s42
      %p46 = pneg %p40
      %p47 = scmp.eq.s32.totalorder %s10, 1
      %p48 = por %p46, %p47
      %p49 = scmp.ne.s32.totalorder %s41, %s44
      %p50 = scmp.eq.s32.totalorder %s10, 0
      %p51 = por %p49, %p50
      %p52 = scmp.ne.s32.totalorder %s41, %s44
      %p53 = scmp.eq.s32.totalorder %s15, 1
      %p54 = por %p52, %p53
      %p55 = scmp.ne.s32.totalorder %s44, %s45
      %p56 = scmp.eq.s32.totalorder %s15, 0
      %p57 = por %p55, %p56
      %p58 = scmp.ne.s32.totalorder %s44, %s45
      %p59 = scmp.eq.s32.totalorder %s16, 1
      %p60 = por %p58, %p59
      %p62 = scmp.ne.s32.totalorder %s45, %s61
      %p63 = scmp.eq.s32.totalorder %s16, 0
      %p64 = por %p62, %p63
      %s65 = ssub.s32 %s19, %s28
      %p66 = scmp.eq.s32.totalorder %s65, 0
      %s68 = sadd.s32 %s67, 1
      %s69 = scalar_select %p66, %s67, %s68
      %p72 = pneg %p66
      %p73 = scmp.eq.s32.totalorder %s10, 1
      %p74 = por %p72, %p73
      %p75 = scmp.ne.s32.totalorder %s67, %s70
      %p76 = scmp.eq.s32.totalorder %s10, 0
      %p77 = por %p75, %p76
      %p78 = scmp.ne.s32.totalorder %s67, %s70
      %p79 = scmp.eq.s32.totalorder %s15, 1
      %p80 = por %p78, %p79
      %p81 = scmp.ne.s32.totalorder %s70, %s71
      %p82 = scmp.eq.s32.totalorder %s15, 0
      %p83 = por %p81, %p82
      %p84 = scmp.ne.s32.totalorder %s70, %s71
      %p85 = scmp.eq.s32.totalorder %s16, 1
      %p86 = por %p84, %p85
      %p88 = scmp.ne.s32.totalorder %s71, %s87
      %p89 = scmp.eq.s32.totalorder %s16, 0
      %p90 = por %p88, %p89
      %s91 = ssub.s32 %s19, %s28
      %p92 = scmp.eq.s32.totalorder %s91, 0
      %s94 = sadd.s32 %s93, 1
      %s95 = scalar_select %p92, %s93, %s94
      %p98 = pneg %p92
      %p99 = scmp.eq.s32.totalorder %s10, 1
      %p100 = por %p98, %p99
      %p101 = scmp.ne.s32.totalorder %s93, %s96
      %p102 = scmp.eq.s32.totalorder %s10, 0
      %p103 = por %p101, %p102
      %p104 = scmp.ne.s32.totalorder %s93, %s96
      %p105 = scmp.eq.s32.totalorder %s15, 1
      %p106 = por %p104, %p105
      %p107 = scmp.ne.s32.totalorder %s96, %s97
      %p108 = scmp.eq.s32.totalorder %s15, 0
      %p109 = por %p107, %p108
      %p110 = scmp.ne.s32.totalorder %s96, %s97
      %p111 = scmp.eq.s32.totalorder %s16, 1
      %p112 = por %p110, %p111
      %p114 = scmp.ne.s32.totalorder %s97, %s113
      %p115 = scmp.eq.s32.totalorder %s16, 0
      %p116 = por %p114, %p115
      %s117 = ssub.s32 %s17, %s36
      %s118 = ssub.s32 %s19, %s28
      %s119 = sor.u32 %s117, %s118
      %s120 = ssub.s32 %s18, %s32
      %s121 = sor.u32 %s119, %s120
      %p122 = scmp.eq.s32.totalorder %s121, 0
      %s124 = sadd.s32 %s123, 1
      %s125 = scalar_select %p122, %s123, %s124
      %p128 = pneg %p122
      %p129 = scmp.eq.s32.totalorder %s10, 1
      %p130 = por %p128, %p129
      %p131 = scmp.ne.s32.totalorder %s123, %s126
      %p132 = scmp.eq.s32.totalorder %s10, 0
      %p133 = por %p131, %p132
      %p134 = scmp.ne.s32.totalorder %s123, %s126
      %p135 = scmp.eq.s32.totalorder %s15, 1
      %p136 = por %p134, %p135
      %p137 = scmp.ne.s32.totalorder %s126, %s127
      %p138 = scmp.eq.s32.totalorder %s15, 0
      %p139 = por %p137, %p138
      %p140 = scmp.ne.s32.totalorder %s126, %s127
      %p141 = scmp.eq.s32.totalorder %s16, 1
      %p142 = por %p140, %p141
      %p144 = scmp.ne.s32.totalorder %s127, %s143
      %p145 = scmp.eq.s32.totalorder %s16, 0
      %p146 = por %p144, %p145
      %p147 = scmp.le.s32.totalorder 1, %s10
      %p148 = scmp.lt.s32.totalorder %s10, 3
      %p149 = pnand %p147, %p148
      %p150 = pneg %p149
      // Predicated region
      $region9: #{tpu_custom_call.1} parent=5 // pred_check
        _
      $region10: #{tpu_custom_call.1} parent=5 // pred_check_branch
        %152 = sbr.rel (%p149) target = $region12
      $region11: #{tpu_custom_call.1} parent=5 // pred_region
        %s153 = ssub.s32 %s10, 1
        // Predicated region
        $region13: #{tpu_custom_call.1} parent=11 // pred_check
          %p154 = pneg %p83
        $region14: #{tpu_custom_call.1} parent=11 // pred_check_branch
          %156 = sbr.rel (%p154) target = $region16
        $region15: #{tpu_custom_call.1} parent=11 // pred_region
          %s158 = ssub.s32 128, 128
          %159 = vsyncadd [#allocation3], %s158
          %s160 = smul.addr %s22, 128
          %s161 = scalar_lea.hbm %s1, %s160
          %s163 = sshll.u32 [#allocation2], 4
          %s164 = int_to_ptr.vmem [resolvable:$true] %s163
          %166 = dma.hbm_to_vmem [thread:$0]  %s161, 128, %s164, [#allocation3]
        $region16: #{tpu_custom_call.1} parent=11 // pred_fallthru
          _
        // Predicated region
        $region17: #{tpu_custom_call.1} parent=11 // pred_check
          %p167 = pneg %p109
        $region18: #{tpu_custom_call.1} parent=11 // pred_check_branch
          %169 = sbr.rel (%p167) target = $region20
        $region19: #{tpu_custom_call.1} parent=11 // pred_region
          %p170 = scmp.lt.s32.totalorder %s22, 0
          %s171 = scalar_select %p170, %s22, 0
          %s172 = smul.addr %s171, 8
          %s173 = scalar_lea.vmem %s2, %s172
        $region20: #{tpu_custom_call.1} parent=11 // pred_fallthru
          _
      $region12: #{tpu_custom_call.1} parent=5 // pred_fallthru
        _
      %p174 = scmp.lt.s32.totalorder %s10, 2
      // Predicated region
      $region21: #{tpu_custom_call.1} parent=5 // pred_check
        %p175 = pneg %p174
      $region22: #{tpu_custom_call.1} parent=5 // pred_check_branch
        %177 = sbr.rel (%p175) target = $region24
      $region23: #{tpu_custom_call.1} parent=5 // pred_region
        // Predicated region
        $region25: #{tpu_custom_call.1} parent=23 // pred_check
          %p178 = pneg %p51
        $region26: #{tpu_custom_call.1} parent=23 // pred_check_branch
          %180 = sbr.rel (%p178) target = $region28
        $region27: #{tpu_custom_call.1} parent=23 // pred_region
          %p181 = scmp.lt.s32.totalorder %s17, 1
          %s182 = scalar_select %p181, %s17, 1
          %p183 = scmp.lt.s32.totalorder %s18, 0
          %s184 = scalar_select %p183, %s18, 0
          %s185 = sadd.s32 %s184, %s182
          %s186 = smul.addr %s185, 4
          %s187 = scalar_lea.vmem %s0, %s186
        $region28: #{tpu_custom_call.1} parent=23 // pred_fallthru
          _
      $region24: #{tpu_custom_call.1} parent=5 // pred_fallthru
        _
      %p188 = scmp.le.s32.totalorder 1, %s10
      %p189 = scmp.lt.s32.totalorder %s10, 3
      %p190 = pnand %p188, %p189
      %p191 = pneg %p190
      // Predicated region
      $region29: #{tpu_custom_call.1} parent=5 // pred_check
        _
      $region30: #{tpu_custom_call.1} parent=5 // pred_check_branch
        %193 = sbr.rel (%p190) target = $region32
      $region31: #{tpu_custom_call.1} parent=5 // pred_region
        %s194 = ssub.s32 %s10, 1
        // Predicated region
        $region33: #{tpu_custom_call.1} parent=31 // pred_check
          %p195 = pneg %p83
        $region34: #{tpu_custom_call.1} parent=31 // pred_check_branch
          %197 = sbr.rel (%p195) target = $region36
        $region35: #{tpu_custom_call.1} parent=31 // pred_region
          %198 = dma.done [#allocation3], 128
        $region36: #{tpu_custom_call.1} parent=31 // pred_fallthru
          _
        %p199 = scmp.lt.s32.totalorder %s20, 1
        %s200 = scalar_select %p199, %s20, 1
        %p201 = scmp.lt.s32.totalorder %s21, 0
        %s202 = scalar_select %p201, %s21, 0
        %s203 = sadd.s32 %s202, %s200
        %s204 = smul.addr %s203, 4
        %s205 = scalar_lea.vmem %s0, %s204
        %p206 = pneg %p57
        %p207 = pneg %p54
        %p208 = pneg %p83
        %p209 = pneg %p80
        %p210 = scmp.lt.s32.totalorder %s22, 0
        %s211 = scalar_select %p210, %s22, 0
        %s212 = smul.addr %s211, 8
        %s213 = scalar_lea.vmem %s2, %s212
        %p214 = pneg %p109
        %p215 = pneg %p106
        %p216 = pneg %p139
        %p217 = pneg %p136
        %p218 = scmp.lt.s32.totalorder %s20, 1
        %s219 = scalar_select %p218, %s20, 1
        %p220 = scmp.lt.s32.totalorder %s22, 0
        %s221 = scalar_select %p220, %s22, 0
        %p222 = scmp.lt.s32.totalorder %s21, 0
        %s223 = scalar_select %p222, %s21, 0
        %s224 = sadd.s32 %s223, %s221
        %s225 = sadd.s32 %s224, %s219
        %s226 = smul.addr %s225, 8
        %s227 = scalar_lea.vmem %s3, %s226
        %p228 = scmp.lt.s32.totalorder %s20, 1
        %s229 = scalar_select %p228, %s20, 1
        %p230 = scmp.lt.s32.totalorder %s21, 0
        %s231 = scalar_select %p230, %s21, 0
        %s232 = sadd.s32 %s231, %s229
        %s233 = smul.addr %s232, 4
        %s234 = scalar_lea.vmem %s0, %s233
        %p235 = scmp.lt.s32.totalorder %s22, 0
        %s236 = scalar_select %p235, %s22, 0
        %s237 = smul.addr %s236, 8
        %s238 = scalar_lea.vmem %s2, %s237
        %p239 = scmp.lt.s32.totalorder %s20, 1
        %s240 = scalar_select %p239, %s20, 1
        %p241 = scmp.lt.s32.totalorder %s22, 0
        %s242 = scalar_select %p241, %s22, 0
        %p243 = scmp.lt.s32.totalorder %s21, 0
        %s244 = scalar_select %p243, %s21, 0
        %s245 = sadd.s32 %s244, %s242
        %s246 = sadd.s32 %s245, %s240
        %s247 = smul.addr %s246, 8
        %s248 = scalar_lea.vmem %s3, %s247
        %v249 = vld [vmem:[%s234] sm:$0xf]
        %251 = vrot.lane.b32.xlu0 %v249, 4
        %v252 = vpop.permute.xlu0 %251
        %vm254 = vcmask 31744
        %v255 = vsel %vm254, 0.0, %v252
        %v257 = vrot.slane %v255, 4
        %258 = vrot.lane.b32.xlu0 %v257, 126
        %v259 = vpop.permute.xlu0 %258
        %261 = vrot.lane.b32.xlu0 %v255, 124
        %v262 = vpop.permute.xlu0 %261
        %vm263 = vcmask 1043456
        %v264 = vsel %vm263, %v255, %v259
        %v265 = vld [vmem:[#allocation2] sm:$0x3f]
        %v266 = vld [vmem:[%s238] sm:$0x3f]
        %268 = vset.pattern.permute.xlu0 0
        %269 = vperm.xlu0 %268, %v266
        %v270 = vpop.permute.xlu0 %269
        %vm272 = vcmask 97280
        %v274 = vsel %vm272, %v265, 0
        %v276 = vsel %vm263, %v262, 0
        %278 = vmatprep.subr.mxu0 0.0
        %279 = vmatpush1.msra.mxu0 0.0
        %280 = vmatprep.subr.mxu0 0.0
        %281 = vmatpush1.msra.mxu0 0.0
        %282 = vmatprep.subr.mxu0 0.0
        %283 = vmatpush1.msra.mxu0 0.0
        %284 = vmatprep.subr.mxu0 0.0
        %285 = vmatpush1.msra.mxu0 0.0
        %286 = vmatprep.subr.mxu0 0.0
        %287 = vmatpush1.msra.mxu0 0.0
        %288 = vmatprep.subr.mxu0 0.0
        %289 = vmatpush1.msra.mxu0 0.0
        %290 = vmatprep.subr.mxu0 0.0
        %291 = vmatpush1.msra.mxu0 0.0
        %292 = vmatprep.subr.mxu0 0.0
        %293 = vmatpush1.msra.mxu0 0.0
        %294 = vmatprep.subr.mxu0 0.0
        %295 = vmatpush1.msra.mxu0 0.0
        %296 = vmatprep.subr.mxu0 0.0
        %297 = vmatpush1.msra.mxu0 0.0
        %298 = vmatprep.subr.mxu0 0.0
        %299 = vmatpush1.msra.mxu0 0.0
        %300 = vmatprep.subr.mxu0 0.0
        %301 = vmatpush1.msra.mxu0 0.0
        %302 = vmatprep.subr.mxu0 0.0
        %303 = vmatpush1.msra.mxu0 0.0
        %304 = vmatprep.subr.mxu0 0.0
        %305 = vmatpush1.msra.mxu0 0.0
        %306 = vmatprep.subr.mxu0 0.0
        %307 = vmatpush1.msra.mxu0 %v276
        %308 = vmatprep.subr.mxu0 0.0
        %309 = vmatpush1.msra.mxu0 %v264
        %310 = vmatprep.subr.mxu0 0.0
        %311 = vmatpush2.msra.mxu0 0.0
        %312 = vmatprep.subr.mxu0 0.0
        %313 = vmatpush2.msra.mxu0 0.0
        %314 = vmatprep.subr.mxu0 0.0
        %315 = vmatpush2.msra.mxu0 0.0
        %316 = vmatprep.subr.mxu0 0.0
        %317 = vmatpush2.msra.mxu0 0.0
        %318 = vmatprep.subr.mxu0 0.0
        %319 = vmatpush2.msra.mxu0 0.0
        %320 = vmatprep.subr.mxu0 0.0
        %321 = vmatpush2.msra.mxu0 0.0
        %322 = vmatprep.subr.mxu0 0.0
        %323 = vmatpush2.msra.mxu0 0.0
        %324 = vmatprep.subr.mxu0 0.0
        %325 = vmatpush2.msra.mxu0 0.0
        %326 = vmatprep.subr.mxu0 0.0
        %327 = vmatpush2.msra.mxu0 0.0
        %328 = vmatprep.subr.mxu0 0.0
        %329 = vmatpush2.msra.mxu0 0.0
        %330 = vmatprep.subr.mxu0 0.0
        %331 = vmatpush2.msra.mxu0 0.0
        %332 = vmatprep.subr.mxu0 0.0
        %333 = vmatpush2.msra.mxu0 0.0
        %334 = vmatprep.subr.mxu0 0.0
        %335 = vmatpush2.msra.mxu0 0.0
        %336 = vmatprep.subr.mxu0 0.0
        %337 = vmatpush2.msra.mxu0 0.0
        %338 = vmatprep.subr.mxu0 0.0
        %339 = vmatpush2.msra.mxu0 0.0
        %340 = vmatprep.subr.mxu0 0.0
        %341 = vmatpush2.msra.mxu0 0.0
        %342 = vmatprep.mubr.f32.mxu0 0.0
        %343 = vmatmul.mubr.f32.gmra.mxu0 %v274
        %v344 = vpop.f32.mrf.mxu0
        %v345 = vadd.f32 %v270, %v344
        %v346 = vpop.f32.mrf.mxu0
        %347 = vdwg.mxu0
        %vm348 = vcmask 128000
        %349 = vst.msk [vmem:[%s248] sm:$0x3f] %vm348, %v345
        %p350 = scmp.lt.s32.totalorder %s20, 1
        %s351 = scalar_select %p350, %s20, 1
        %p352 = scmp.lt.s32.totalorder %s22, 0
        %s353 = scalar_select %p352, %s22, 0
        %p354 = scmp.lt.s32.totalorder %s21, 0
        %s355 = scalar_select %p354, %s21, 0
        %s356 = sadd.s32 %s355, %s353
        %s357 = sadd.s32 %s356, %s351
        %s358 = smul.addr %s357, 8
        %s359 = scalar_lea.vmem %s3, %s358
        // Predicated region
        $region37: #{tpu_custom_call.1} parent=31 // pred_check
          %p360 = pneg %p136
        $region38: #{tpu_custom_call.1} parent=31 // pred_check_branch
          %362 = sbr.rel (%p360) target = $region40
        $region39: #{tpu_custom_call.1} parent=31 // pred_region
          _
        $region40: #{tpu_custom_call.1} parent=31 // pred_fallthru
          _
      $region32: #{tpu_custom_call.1} parent=5 // pred_fallthru
        _
      %p363 = scmp.le.s32.totalorder 2, %s10
      // Predicated region
      $region41: #{tpu_custom_call.1} parent=5 // pred_check
        %p364 = pneg %p363
      $region42: #{tpu_custom_call.1} parent=5 // pred_check_branch
        %366 = sbr.rel (%p364) target = $region44
      $region43: #{tpu_custom_call.1} parent=5 // pred_region
        %s367 = ssub.s32 %s10, 2
        // Predicated region
        $region45: #{tpu_custom_call.1} parent=43 // pred_check
          %p368 = pneg %p142
        $region46: #{tpu_custom_call.1} parent=43 // pred_check_branch
          %370 = sbr.rel (%p368) target = $region48
        $region47: #{tpu_custom_call.1} parent=43 // pred_region
          %p371 = scmp.lt.s32.totalorder %s23, 1
          %s372 = scalar_select %p371, %s23, 1
          %p373 = scmp.lt.s32.totalorder %s25, 0
          %s374 = scalar_select %p373, %s25, 0
          %p375 = scmp.lt.s32.totalorder %s24, 0
          %s376 = scalar_select %p375, %s24, 0
          %s377 = sadd.s32 %s376, %s374
          %s378 = sadd.s32 %s377, %s372
          %s379 = smul.addr %s378, 8
          %s380 = scalar_lea.vmem %s3, %s379
        $region48: #{tpu_custom_call.1} parent=43 // pred_fallthru
          _
      $region44: #{tpu_custom_call.1} parent=5 // pred_fallthru
        _
    $region6: #{tpu_custom_call.1} parent=1 // loop_footer
      %s14 = sadd.s32 1, %s10
    $region7: #{tpu_custom_call.1} parent=1 // loop_footer_branch
      %9 = sbr.rel target = $region3
    $region8: #{tpu_custom_call.1} parent=1 // loop_exit
      _
    %381 = vsyncpa [#allocation3], 1
    %s382 = scalar_lea.sflag [#allocation3], 1
    %383 = vsyncpa %s382, 1

</llo_original>
